<compile_context>
chip_gen: v5e
topology: v5e:2x2
jax: 0.10.0
libtpu: 0.0.40
codegen_flags: <defaults>
</compile_context>

<pallas_src>
import jax
import jax.numpy as jnp
from jax.experimental import pallas as pl
from jax.experimental.pallas import tpu as pltpu


def _round_up(v, m):
    return ((v + m - 1) // m) * m


def conv_tag_para(x, weight, gamma, beta, alpha, *, stride=1, eps=1e-3):
    """x: (N, Cin, H, W) float32 NCHW; weight: (Cout, Cin, kH, kW). Returns NCHW."""
    N, C, H, W = x.shape
    Cout, Cin, kH, kW = weight.shape
    assert Cin == C
    assert stride == 1, "only stride=1 supported by the shift-and-accumulate path"
    # TODO(synk): stride > 1 would need strided lane slices; not implemented here.
    pad = (kH - 1) // 2
    Ho, Wo = H, W
    Lout = Ho * Wo                      # flattened output spatial per image (lane axis)
    left_pad = pad * W + pad            # flat zero halo covering the vertical taps
    Lin = _round_up(H * W + 2 * left_pad, 128)

    # --- cheap staging (no kHxkW blow-up, no transpose): flatten spatial, pad halo, bf16 ---
    xf = jnp.pad(x.reshape(N, C, H * W).astype(jnp.bfloat16),
                 ((0, 0), (0, 0), (left_pad, Lin - H * W - left_pad)))
    # Per-tap weight matrices, ordered t = kh*kW + kw, each (Cout, Cin), bf16 for the MXU.
    wt = jnp.transpose(weight.reshape(Cout, Cin, kH * kW), (2, 0, 1)).astype(jnp.bfloat16)
    # Horizontal-edge masks: tap kw reads column (wo + kw - pad); zero where out of range
    # (vertical out-of-range taps land in the zero halo automatically).
    col = jnp.arange(Lout, dtype=jnp.int32) % Wo
    edge_mask = jnp.stack(
        [((col + kw - pad) >= 0) & ((col + kw - pad) < W) for kw in range(kW)]
    ).astype(jnp.bfloat16)              # (kW, Lout), values exactly 0.0 / 1.0

    def conv_stats_kernel(x_ref, w_ref, m_ref, y_ref, sum_ref, sq_ref):
        # x_ref: (1, Cin, Lin) bf16 | w_ref: (kH*kW, Cout, Cin) bf16 | m_ref: (kW, Lout) bf16
        # y_ref: (1, Cout, Lout) bf16 | sum_ref / sq_ref: (1, Cout, 1) f32 per-image partials
        acc = jnp.zeros((Cout, Lout), jnp.float32)
        for kh in range(kH):
            for kw in range(kW):
                # shifted input tap: implicit im2col, static lane offset
                xs = x_ref[0, :, pl.ds(kh * W + kw, Lout)]        # (Cin, Lout) bf16
                if kw != pad:                                     # zero image-edge columns
                    xs = xs * m_ref[kw:kw + 1, :]
                acc += jnp.dot(w_ref[kh * kW + kw], xs,
                               preferred_element_type=jnp.float32)
        y_ref[0] = acc.astype(y_ref.dtype)                        # lane-dense (8, 256) store
        # Per-image partial statistics (f32, from the un-rounded accumulator).
        sum_ref[0] = jnp.sum(acc, axis=1, keepdims=True)
        sq_ref[0] = jnp.sum(acc * acc, axis=1, keepdims=True)

    cparams = pltpu.CompilerParams(
        dimension_semantics=("parallel",),          # no revisited accumulators -> parallel OK
        vmem_limit_bytes=32 * 1024 * 1024,          # explicit, fits v7x/v6e/v5e
    )

    conv_out, psum, psq = pl.pallas_call(
        conv_stats_kernel,
        out_shape=(
            jax.ShapeDtypeStruct((N, Cout, Lout), jnp.bfloat16),
            jax.ShapeDtypeStruct((N, Cout, 1), jnp.float32),
            jax.ShapeDtypeStruct((N, Cout, 1), jnp.float32),
        ),
        grid_spec=pltpu.PrefetchScalarGridSpec(
            num_scalar_prefetch=0,
            grid=(N,),
            in_specs=[
                pl.BlockSpec((1, Cin, Lin), lambda n: (n, 0, 0)),
                pl.BlockSpec((kH * kW, Cout, Cin), lambda n: (0, 0, 0)),
                pl.BlockSpec((kW, Lout), lambda n: (0, 0)),
            ],
            out_specs=[
                pl.BlockSpec((1, Cout, Lout), lambda n: (n, 0, 0)),
                pl.BlockSpec((1, Cout, 1), lambda n: (n, 0, 0)),
                pl.BlockSpec((1, Cout, 1), lambda n: (n, 0, 0)),
            ],
        ),
        compiler_params=cparams,
    )(xf, wt, edge_mask)

    # --- fold train-mode BatchNorm (biased variance) into a per-channel affine ---
    count = jnp.float32(N * Lout)
    mean = jnp.sum(psum, axis=0) / count            # (Cout, 1)
    var = jnp.sum(psq, axis=0) / count - mean * mean
    inv_std = jax.lax.rsqrt(var + eps)
    scale = gamma.reshape(Cout, 1) * inv_std
    shift = beta.reshape(Cout, 1) - mean * scale
    alpha2 = alpha.reshape(Cout, 1).astype(jnp.float32)

    def bn_prelu_kernel(y_ref, scale_ref, shift_ref, alpha_ref, o_ref):
        z = y_ref[0].astype(jnp.float32) * scale_ref[...] + shift_ref[...]
        o_ref[0] = jnp.where(z >= 0.0, z, alpha_ref[...] * z)

    out = pl.pallas_call(
        bn_prelu_kernel,
        out_shape=jax.ShapeDtypeStruct((N, Cout, Lout), jnp.float32),
        grid_spec=pltpu.PrefetchScalarGridSpec(
            num_scalar_prefetch=0,
            grid=(N,),
            in_specs=[
                pl.BlockSpec((1, Cout, Lout), lambda n: (n, 0, 0)),
                pl.BlockSpec((Cout, 1), lambda n: (0, 0)),
                pl.BlockSpec((Cout, 1), lambda n: (0, 0)),
                pl.BlockSpec((Cout, 1), lambda n: (0, 0)),
            ],
            out_specs=pl.BlockSpec((1, Cout, Lout), lambda n: (n, 0, 0)),
        ),
        compiler_params=cparams,
    )(conv_out, scale, shift, alpha2)

    # (N, Cout, Ho*Wo) is already NCHW order -> pure (free) reshape, no transpose/slice.
    return out.reshape(N, Cout, Ho, Wo)


def _reference(x, weight, gamma, beta, alpha, *, stride=1, eps=1e-3):
    pad = (weight.shape[2] - 1) // 2
    y = jax.lax.conv_general_dilated(
        x, weight, (stride, stride), ((pad, pad), (pad, pad)),
        dimension_numbers=("NCHW", "OIHW", "NCHW"))
    mean = y.mean(axis=(0, 2, 3), keepdims=True)
    var = y.var(axis=(0, 2, 3), keepdims=True)          # biased, like PyTorch train-mode BN
    yn = (y - mean) * jax.lax.rsqrt(var + eps)
    yn = yn * gamma.reshape(1, -1, 1, 1) + beta.reshape(1, -1, 1, 1)
    a = alpha.reshape(1, -1, 1, 1)
    return jnp.where(yn >= 0.0, yn, a * yn)


if __name__ == "__main__":
    key = jax.random.PRNGKey(0)
    k1, k2 = jax.random.split(key)

    # Module hyper-params: ConvTAGpara(nIn=4, nOut=8, kSize=3, stride=1)
    N, Cin, H, W = 2, 4, 16, 16
    Cout, kSize, stride = 8, 3, 1

    x = jax.random.normal(k1, (N, Cin, H, W), jnp.float32)
    weight = jax.random.normal(k2, (Cout, Cin, kSize, kSize), jnp.float32) * 0.1
    gamma = jnp.ones((Cout,), jnp.float32)               # BatchNorm2d weight init
    beta = jnp.zeros((Cout,), jnp.float32)               # BatchNorm2d bias init
    alpha = jnp.full((Cout,), 0.25, jnp.float32)         # PReLU(nOut) init

    out = jax.block_until_ready(
        conv_tag_para(x, weight, gamma, beta, alpha, stride=stride, eps=1e-3))

    ref = _reference(x, weight, gamma, beta, alpha, stride=stride, eps=1e-3)
    assert out.shape == (N, Cout, H, W), out.shape
    max_err = float(jnp.max(jnp.abs(out - ref)))
    assert max_err < 5e-2, f"max abs err too large: {max_err}"
    print("KERNEL_OK")
</pallas_src>

<mosaic_0001>
module attributes {stable_mosaic.version = 11 : i64} {
  func.func @conv_stats_kernel(%arg0: i32, %arg1: memref<1x4x384xbf16, #tpu.memory_space<vmem>>, %arg2: memref<9x8x4xbf16, #tpu.memory_space<vmem>>, %arg3: memref<3x256xbf16, #tpu.memory_space<vmem>>, %arg4: memref<1x8x256xbf16, #tpu.memory_space<vmem>>, %arg5: memref<1x8x1xf32, #tpu.memory_space<vmem>>, %arg6: memref<1x8x1xf32, #tpu.memory_space<vmem>>) attributes {dimension_semantics = [#tpu.dimension_semantics<parallel>], iteration_bounds = array<i64: 2>, scalar_prefetch = 0 : i64, scratch_operands = 0 : i64, tpu.core_type = #tpu.core_type<tc>, window_params = [{transform_indices = @transform_0, window_bounds = array<i64: 1, 4, 384>}, {pipeline_mode = #tpu.pipeline_mode<synchronous>, transform_indices = @transform_1, window_bounds = array<i64: 9, 8, 4>}, {pipeline_mode = #tpu.pipeline_mode<synchronous>, transform_indices = @transform_2, window_bounds = array<i64: 3, 256>}, {transform_indices = @transform_3, window_bounds = array<i64: 1, 8, 256>}, {transform_indices = @transform_4, window_bounds = array<i64: 1, 8, 1>}, {transform_indices = @transform_5, window_bounds = array<i64: 1, 8, 1>}]} {
    %cst = arith.constant 0.000000e+00 : f32
    %0 = vector.broadcast %cst : f32 to vector<8x256xf32>
    %c0 = arith.constant 0 : index
    %c0_0 = arith.constant 0 : index
    %c0_1 = arith.constant 0 : index
    %1 = vector.load %arg1[%c0, %c0_0, %c0_1] : memref<1x4x384xbf16, #tpu.memory_space<vmem>>, vector<1x4x256xbf16>
    %2 = vector.shape_cast %1 : vector<1x4x256xbf16> to vector<4x256xbf16>
    %c0_2 = arith.constant 0 : index
    %c0_3 = arith.constant 0 : index
    %3 = vector.load %arg3[%c0_2, %c0_3] : memref<3x256xbf16, #tpu.memory_space<vmem>>, vector<1x256xbf16>
    %4 = vector.broadcast %3 : vector<1x256xbf16> to vector<4x256xbf16>
    %5 = arith.mulf %2, %4 : vector<4x256xbf16>
    %c0_4 = arith.constant 0 : index
    %c0_5 = arith.constant 0 : index
    %c0_6 = arith.constant 0 : index
    %6 = vector.load %arg2[%c0_4, %c0_5, %c0_6] : memref<9x8x4xbf16, #tpu.memory_space<vmem>>, vector<1x8x4xbf16>
    %7 = vector.shape_cast %6 : vector<1x8x4xbf16> to vector<8x4xbf16>
    %cst_7 = arith.constant dense<0.000000e+00> : vector<8x256xf32>
    %8 = tpu.matmul %7, %5, %cst_7 {dimension_numbers = #tpu.dot_dimension_numbers<[1], [0], [0], [1], [0, 0, 1, 1], [], []>} : vector<8x4xbf16>, vector<4x256xbf16>, vector<8x256xf32> -> vector<8x256xf32>
    %9 = arith.addf %0, %8 : vector<8x256xf32>
    %c0_8 = arith.constant 0 : index
    %c0_9 = arith.constant 0 : index
    %c1 = arith.constant 1 : index
    %10 = vector.load %arg1[%c0_8, %c0_9, %c1] : memref<1x4x384xbf16, #tpu.memory_space<vmem>>, vector<1x4x256xbf16>
    %11 = vector.shape_cast %10 : vector<1x4x256xbf16> to vector<4x256xbf16>
    %c1_10 = arith.constant 1 : index
    %c0_11 = arith.constant 0 : index
    %c0_12 = arith.constant 0 : index
    %12 = vector.load %arg2[%c1_10, %c0_11, %c0_12] : memref<9x8x4xbf16, #tpu.memory_space<vmem>>, vector<1x8x4xbf16>
    %13 = vector.shape_cast %12 : vector<1x8x4xbf16> to vector<8x4xbf16>
    %cst_13 = arith.constant dense<0.000000e+00> : vector<8x256xf32>
    %14 = tpu.matmul %13, %11, %cst_13 {dimension_numbers = #tpu.dot_dimension_numbers<[1], [0], [0], [1], [0, 0, 1, 1], [], []>} : vector<8x4xbf16>, vector<4x256xbf16>, vector<8x256xf32> -> vector<8x256xf32>
    %15 = arith.addf %9, %14 : vector<8x256xf32>
    %c0_14 = arith.constant 0 : index
    %c0_15 = arith.constant 0 : index
    %c2 = arith.constant 2 : index
    %16 = vector.load %arg1[%c0_14, %c0_15, %c2] : memref<1x4x384xbf16, #tpu.memory_space<vmem>>, vector<1x4x256xbf16>
    %17 = vector.shape_cast %16 : vector<1x4x256xbf16> to vector<4x256xbf16>
    %c2_16 = arith.constant 2 : index
    %c0_17 = arith.constant 0 : index
    %18 = vector.load %arg3[%c2_16, %c0_17] : memref<3x256xbf16, #tpu.memory_space<vmem>>, vector<1x256xbf16>
    %19 = vector.broadcast %18 : vector<1x256xbf16> to vector<4x256xbf16>
    %20 = arith.mulf %17, %19 : vector<4x256xbf16>
    %c2_18 = arith.constant 2 : index
    %c0_19 = arith.constant 0 : index
    %c0_20 = arith.constant 0 : index
    %21 = vector.load %arg2[%c2_18, %c0_19, %c0_20] : memref<9x8x4xbf16, #tpu.memory_space<vmem>>, vector<1x8x4xbf16>
    %22 = vector.shape_cast %21 : vector<1x8x4xbf16> to vector<8x4xbf16>
    %cst_21 = arith.constant dense<0.000000e+00> : vector<8x256xf32>
    %23 = tpu.matmul %22, %20, %cst_21 {dimension_numbers = #tpu.dot_dimension_numbers<[1], [0], [0], [1], [0, 0, 1, 1], [], []>} : vector<8x4xbf16>, vector<4x256xbf16>, vector<8x256xf32> -> vector<8x256xf32>
    %24 = arith.addf %15, %23 : vector<8x256xf32>
    %c0_22 = arith.constant 0 : index
    %c0_23 = arith.constant 0 : index
    %c16 = arith.constant 16 : index
    %25 = vector.load %arg1[%c0_22, %c0_23, %c16] : memref<1x4x384xbf16, #tpu.memory_space<vmem>>, vector<1x4x256xbf16>
    %26 = vector.shape_cast %25 : vector<1x4x256xbf16> to vector<4x256xbf16>
    %c0_24 = arith.constant 0 : index
    %c0_25 = arith.constant 0 : index
    %27 = vector.load %arg3[%c0_24, %c0_25] : memref<3x256xbf16, #tpu.memory_space<vmem>>, vector<1x256xbf16>
    %28 = vector.broadcast %27 : vector<1x256xbf16> to vector<4x256xbf16>
    %29 = arith.mulf %26, %28 : vector<4x256xbf16>
    %c3 = arith.constant 3 : index
    %c0_26 = arith.constant 0 : index
    %c0_27 = arith.constant 0 : index
    %30 = vector.load %arg2[%c3, %c0_26, %c0_27] : memref<9x8x4xbf16, #tpu.memory_space<vmem>>, vector<1x8x4xbf16>
    %31 = vector.shape_cast %30 : vector<1x8x4xbf16> to vector<8x4xbf16>
    %cst_28 = arith.constant dense<0.000000e+00> : vector<8x256xf32>
    %32 = tpu.matmul %31, %29, %cst_28 {dimension_numbers = #tpu.dot_dimension_numbers<[1], [0], [0], [1], [0, 0, 1, 1], [], []>} : vector<8x4xbf16>, vector<4x256xbf16>, vector<8x256xf32> -> vector<8x256xf32>
    %33 = arith.addf %24, %32 : vector<8x256xf32>
    %c0_29 = arith.constant 0 : index
    %c0_30 = arith.constant 0 : index
    %c17 = arith.constant 17 : index
    %34 = vector.load %arg1[%c0_29, %c0_30, %c17] : memref<1x4x384xbf16, #tpu.memory_space<vmem>>, vector<1x4x256xbf16>
    %35 = vector.shape_cast %34 : vector<1x4x256xbf16> to vector<4x256xbf16>
    %c4 = arith.constant 4 : index
    %c0_31 = arith.constant 0 : index
    %c0_32 = arith.constant 0 : index
    %36 = vector.load %arg2[%c4, %c0_31, %c0_32] : memref<9x8x4xbf16, #tpu.memory_space<vmem>>, vector<1x8x4xbf16>
    %37 = vector.shape_cast %36 : vector<1x8x4xbf16> to vector<8x4xbf16>
    %cst_33 = arith.constant dense<0.000000e+00> : vector<8x256xf32>
    %38 = tpu.matmul %37, %35, %cst_33 {dimension_numbers = #tpu.dot_dimension_numbers<[1], [0], [0], [1], [0, 0, 1, 1], [], []>} : vector<8x4xbf16>, vector<4x256xbf16>, vector<8x256xf32> -> vector<8x256xf32>
    %39 = arith.addf %33, %38 : vector<8x256xf32>
    %c0_34 = arith.constant 0 : index
    %c0_35 = arith.constant 0 : index
    %c18 = arith.constant 18 : index
    %40 = vector.load %arg1[%c0_34, %c0_35, %c18] : memref<1x4x384xbf16, #tpu.memory_space<vmem>>, vector<1x4x256xbf16>
    %41 = vector.shape_cast %40 : vector<1x4x256xbf16> to vector<4x256xbf16>
    %c2_36 = arith.constant 2 : index
    %c0_37 = arith.constant 0 : index
    %42 = vector.load %arg3[%c2_36, %c0_37] : memref<3x256xbf16, #tpu.memory_space<vmem>>, vector<1x256xbf16>
    %43 = vector.broadcast %42 : vector<1x256xbf16> to vector<4x256xbf16>
    %44 = arith.mulf %41, %43 : vector<4x256xbf16>
    %c5 = arith.constant 5 : index
    %c0_38 = arith.constant 0 : index
    %c0_39 = arith.constant 0 : index
    %45 = vector.load %arg2[%c5, %c0_38, %c0_39] : memref<9x8x4xbf16, #tpu.memory_space<vmem>>, vector<1x8x4xbf16>
    %46 = vector.shape_cast %45 : vector<1x8x4xbf16> to vector<8x4xbf16>
    %cst_40 = arith.constant dense<0.000000e+00> : vector<8x256xf32>
    %47 = tpu.matmul %46, %44, %cst_40 {dimension_numbers = #tpu.dot_dimension_numbers<[1], [0], [0], [1], [0, 0, 1, 1], [], []>} : vector<8x4xbf16>, vector<4x256xbf16>, vector<8x256xf32> -> vector<8x256xf32>
    %48 = arith.addf %39, %47 : vector<8x256xf32>
    %c0_41 = arith.constant 0 : index
    %c0_42 = arith.constant 0 : index
    %c32 = arith.constant 32 : index
    %49 = vector.load %arg1[%c0_41, %c0_42, %c32] : memref<1x4x384xbf16, #tpu.memory_space<vmem>>, vector<1x4x256xbf16>
    %50 = vector.shape_cast %49 : vector<1x4x256xbf16> to vector<4x256xbf16>
    %c0_43 = arith.constant 0 : index
    %c0_44 = arith.constant 0 : index
    %51 = vector.load %arg3[%c0_43, %c0_44] : memref<3x256xbf16, #tpu.memory_space<vmem>>, vector<1x256xbf16>
    %52 = vector.broadcast %51 : vector<1x256xbf16> to vector<4x256xbf16>
    %53 = arith.mulf %50, %52 : vector<4x256xbf16>
    %c6 = arith.constant 6 : index
    %c0_45 = arith.constant 0 : index
    %c0_46 = arith.constant 0 : index
    %54 = vector.load %arg2[%c6, %c0_45, %c0_46] : memref<9x8x4xbf16, #tpu.memory_space<vmem>>, vector<1x8x4xbf16>
    %55 = vector.shape_cast %54 : vector<1x8x4xbf16> to vector<8x4xbf16>
    %cst_47 = arith.constant dense<0.000000e+00> : vector<8x256xf32>
    %56 = tpu.matmul %55, %53, %cst_47 {dimension_numbers = #tpu.dot_dimension_numbers<[1], [0], [0], [1], [0, 0, 1, 1], [], []>} : vector<8x4xbf16>, vector<4x256xbf16>, vector<8x256xf32> -> vector<8x256xf32>
    %57 = arith.addf %48, %56 : vector<8x256xf32>
    %c0_48 = arith.constant 0 : index
    %c0_49 = arith.constant 0 : index
    %c33 = arith.constant 33 : index
    %58 = vector.load %arg1[%c0_48, %c0_49, %c33] : memref<1x4x384xbf16, #tpu.memory_space<vmem>>, vector<1x4x256xbf16>
    %59 = vector.shape_cast %58 : vector<1x4x256xbf16> to vector<4x256xbf16>
    %c7 = arith.constant 7 : index
    %c0_50 = arith.constant 0 : index
    %c0_51 = arith.constant 0 : index
    %60 = vector.load %arg2[%c7, %c0_50, %c0_51] : memref<9x8x4xbf16, #tpu.memory_space<vmem>>, vector<1x8x4xbf16>
    %61 = vector.shape_cast %60 : vector<1x8x4xbf16> to vector<8x4xbf16>
    %cst_52 = arith.constant dense<0.000000e+00> : vector<8x256xf32>
    %62 = tpu.matmul %61, %59, %cst_52 {dimension_numbers = #tpu.dot_dimension_numbers<[1], [0], [0], [1], [0, 0, 1, 1], [], []>} : vector<8x4xbf16>, vector<4x256xbf16>, vector<8x256xf32> -> vector<8x256xf32>
    %63 = arith.addf %57, %62 : vector<8x256xf32>
    %c0_53 = arith.constant 0 : index
    %c0_54 = arith.constant 0 : index
    %c34 = arith.constant 34 : index
    %64 = vector.load %arg1[%c0_53, %c0_54, %c34] : memref<1x4x384xbf16, #tpu.memory_space<vmem>>, vector<1x4x256xbf16>
    %65 = vector.shape_cast %64 : vector<1x4x256xbf16> to vector<4x256xbf16>
    %c2_55 = arith.constant 2 : index
    %c0_56 = arith.constant 0 : index
    %66 = vector.load %arg3[%c2_55, %c0_56] : memref<3x256xbf16, #tpu.memory_space<vmem>>, vector<1x256xbf16>
    %67 = vector.broadcast %66 : vector<1x256xbf16> to vector<4x256xbf16>
    %68 = arith.mulf %65, %67 : vector<4x256xbf16>
    %c8 = arith.constant 8 : index
    %c0_57 = arith.constant 0 : index
    %c0_58 = arith.constant 0 : index
    %69 = vector.load %arg2[%c8, %c0_57, %c0_58] : memref<9x8x4xbf16, #tpu.memory_space<vmem>>, vector<1x8x4xbf16>
    %70 = vector.shape_cast %69 : vector<1x8x4xbf16> to vector<8x4xbf16>
    %cst_59 = arith.constant dense<0.000000e+00> : vector<8x256xf32>
    %71 = tpu.matmul %70, %68, %cst_59 {dimension_numbers = #tpu.dot_dimension_numbers<[1], [0], [0], [1], [0, 0, 1, 1], [], []>} : vector<8x4xbf16>, vector<4x256xbf16>, vector<8x256xf32> -> vector<8x256xf32>
    %72 = arith.addf %63, %71 : vector<8x256xf32>
    %73 = arith.truncf %72 : vector<8x256xf32> to vector<8x256xbf16>
    %c0_60 = arith.constant 0 : index
    %c0_61 = arith.constant 0 : index
    %c0_62 = arith.constant 0 : index
    %74 = vector.load %arg4[%c0_60, %c0_61, %c0_62] : memref<1x8x256xbf16, #tpu.memory_space<vmem>>, vector<1x8x256xbf16>
    %75 = vector.shape_cast %74 : vector<1x8x256xbf16> to vector<8x256xbf16>
    %76 = vector.shape_cast %73 : vector<8x256xbf16> to vector<1x8x256xbf16>
    tpu.vector_store %arg4[%c0_60, %c0_61, %c0_62], %76 {strides = array<i32>} : memref<1x8x256xbf16, #tpu.memory_space<vmem>>, vector<1x8x256xbf16>,
    %cst_63 = arith.constant dense<0.000000e+00> : vector<8xf32>
    %77 = vector.multi_reduction <add>, %72, %cst_63 [1] : vector<8x256xf32> to vector<8xf32>
    %78 = vector.shape_cast %77 : vector<8xf32> to vector<8x1xf32>
    %c0_64 = arith.constant 0 : index
    %c0_65 = arith.constant 0 : index
    %c0_66 = arith.constant 0 : index
    %79 = vector.load %arg5[%c0_64, %c0_65, %c0_66] : memref<1x8x1xf32, #tpu.memory_space<vmem>>, vector<1x8x1xf32>
    %80 = vector.shape_cast %79 : vector<1x8x1xf32> to vector<8x1xf32>
    %81 = vector.shape_cast %78 : vector<8x1xf32> to vector<1x8x1xf32>
    tpu.vector_store %arg5[%c0_64, %c0_65, %c0_66], %81 {strides = array<i32>} : memref<1x8x1xf32, #tpu.memory_space<vmem>>, vector<1x8x1xf32>,
    %82 = arith.mulf %72, %72 : vector<8x256xf32>
    %cst_67 = arith.constant dense<0.000000e+00> : vector<8xf32>
    %83 = vector.multi_reduction <add>, %82, %cst_67 [1] : vector<8x256xf32> to vector<8xf32>
    %84 = vector.shape_cast %83 : vector<8xf32> to vector<8x1xf32>
    %c0_68 = arith.constant 0 : index
    %c0_69 = arith.constant 0 : index
    %c0_70 = arith.constant 0 : index
    %85 = vector.load %arg6[%c0_68, %c0_69, %c0_70] : memref<1x8x1xf32, #tpu.memory_space<vmem>>, vector<1x8x1xf32>
    %86 = vector.shape_cast %85 : vector<1x8x1xf32> to vector<8x1xf32>
    %87 = vector.shape_cast %84 : vector<8x1xf32> to vector<1x8x1xf32>
    tpu.vector_store %arg6[%c0_68, %c0_69, %c0_70], %87 {strides = array<i32>} : memref<1x8x1xf32, #tpu.memory_space<vmem>>, vector<1x8x1xf32>,
    return
  }
  func.func @transform_0(%arg0: i32) -> (i32, i32, i32) {
    %c0_i32 = arith.constant 0 : i32
    %c0_i32_0 = arith.constant 0 : i32
    %c0_i32_1 = arith.constant 0 : i32
    return %arg0, %c0_i32, %c0_i32_0 : i32, i32, i32
  }
  func.func @transform_1(%arg0: i32) -> (i32, i32, i32) {
    %c0_i32 = arith.constant 0 : i32
    %c0_i32_0 = arith.constant 0 : i32
    %c0_i32_1 = arith.constant 0 : i32
    %c0_i32_2 = arith.constant 0 : i32
    return %c0_i32, %c0_i32_0, %c0_i32_1 : i32, i32, i32
  }
  func.func @transform_2(%arg0: i32) -> (i32, i32) {
    %c0_i32 = arith.constant 0 : i32
    %c0_i32_0 = arith.constant 0 : i32
    %c0_i32_1 = arith.constant 0 : i32
    return %c0_i32, %c0_i32_0 : i32, i32
  }
  func.func @transform_3(%arg0: i32) -> (i32, i32, i32) {
    %c0_i32 = arith.constant 0 : i32
    %c0_i32_0 = arith.constant 0 : i32
    %c0_i32_1 = arith.constant 0 : i32
    return %arg0, %c0_i32, %c0_i32_0 : i32, i32, i32
  }
  func.func @transform_4(%arg0: i32) -> (i32, i32, i32) {
    %c0_i32 = arith.constant 0 : i32
    %c0_i32_0 = arith.constant 0 : i32
    %c0_i32_1 = arith.constant 0 : i32
    return %arg0, %c0_i32, %c0_i32_0 : i32, i32, i32
  }
  func.func @transform_5(%arg0: i32) -> (i32, i32, i32) {
    %c0_i32 = arith.constant 0 : i32
    %c0_i32_0 = arith.constant 0 : i32
    %c0_i32_1 = arith.constant 0 : i32
    return %arg0, %c0_i32, %c0_i32_0 : i32, i32, i32
  }
}

</mosaic_0001>

<llo_original>
// kernel: tpu_custom_call.1
$region0: #{tpu_custom_call.1}
  #allocation0 [shape = 'u32[]', space=smem, size = 0x4, offset = 0x4, fixed_abs, tag = 'smem constant byte address 0x4 - core index']
  #allocation1 [shape = 'u32[72,128]{1,0:T(1,128)}', space=vmem, size = 0x9000, scoped, tag = 'internal scratch']
  %s0 = inlined_call_operand.vmem [shape: bf16[2,4,384], index: 0, kind: input, shape index: {}]
  %s1 = inlined_call_operand.vmem [shape: bf16[9,8,4], index: 1, kind: input, shape index: {}]
  %s2 = inlined_call_operand.vmem [shape: bf16[3,256], index: 2, kind: input, shape index: {}]
  %s3 = inlined_call_operand.hbm [shape: bf16[2,8,256], index: 3, kind: output, shape index: {0}]
  %s4 = inlined_call_operand.vmem [shape: f32[2,8,1], index: 4, kind: output, shape index: {1}]
  %s5 = inlined_call_operand.vmem [shape: f32[2,8,1], index: 5, kind: output, shape index: {2}]
  %6 = xla_tuple %s3, %s4, %s5
  %s7 = sld [smem:[#allocation0]]
  $region61: #{tpu_custom_call.1} parent=0
    _
  %s9 = ssub.s32 1, %s7
  %s10 = scalar_select 0, %s9, %s7
  $region1: #{tpu_custom_call.1} parent=0
    #allocation2 [shape = 'u8[8192]{0}', space=vmem, size = 0x2000, scoped, tag = 'output window, operand 0']
    #allocation3 [shape = 's32[2]{0}', space=sflag, size = 0x8, scoped, tag = 'scoped memory for tpu_custom_call.1']
    %11 = vsyncpa [#allocation3], 0
    %s12 = scalar_lea.sflag [#allocation3], 1
    %13 = vsyncpa %s12, 0
    loop: start=0, step=1, limit=4
    $region2: #{tpu_custom_call.1} parent=1 // loop_pre_header
      _
    $region3: #{tpu_custom_call.1} parent=1 // loop_header
      %s15 = sphi 0, %s19
      %p16 = scmp.ge.s32.totalorder %s15, 4
      %s25 = sphi 0, %s27
      %s28 = sphi 0, %s25
      %s29 = sphi 0, %s28
      %s45 = sphi 0, %s29
      %s49 = sphi 0, %s49
      %s51 = sphi 0, %s49
      %s52 = sphi 0, %s51
      %s66 = sphi 0, %s52
      %s70 = sphi 0, %s70
      %s72 = sphi 0, %s70
      %s73 = sphi 0, %s72
      %s87 = sphi 0, %s73
      %s93 = sphi 0, %s95
      %s96 = sphi 0, %s93
      %s97 = sphi 0, %s96
      %s113 = sphi 0, %s97
      %s119 = sphi 0, %s121
      %s122 = sphi 0, %s119
      %s123 = sphi 0, %s122
      %s139 = sphi 0, %s123
      %s145 = sphi 0, %s147
      %s148 = sphi 0, %s145
      %s149 = sphi 0, %s148
      %s165 = sphi 0, %s149
    $region4: #{tpu_custom_call.1} parent=1 // loop_header_branch
      %18 = sbr.rel (%p16) target = $region8
    $region5: #{tpu_custom_call.1} parent=1 // loop_body
      %s20 = ssub.s32 %s15, 1
      %s21 = ssub.s32 %s15, 2
      %s22 = sadd.s32 %s15, 1
      %s23 = ssub.s32 %s15, %s22
      %p24 = scmp.eq.s32.totalorder %s23, 0
      %s26 = sadd.s32 %s25, 1
      %s27 = scalar_select %p24, %s25, %s26
      %p30 = pneg %p24
      %p31 = scmp.eq.s32.totalorder %s15, 1
      %p32 = por %p30, %p31
      %p33 = scmp.ne.s32.totalorder %s25, %s28
      %p34 = scmp.eq.s32.totalorder %s15, 0
      %p35 = por %p33, %p34
      %p36 = scmp.ne.s32.totalorder %s25, %s28
      %p37 = scmp.eq.s32.totalorder %s20, 1
      %p38 = por %p36, %p37
      %p39 = scmp.ne.s32.totalorder %s28, %s29
      %p40 = scmp.eq.s32.totalorder %s20, 0
      %p41 = por %p39, %p40
      %p42 = scmp.ne.s32.totalorder %s28, %s29
      %p43 = scmp.eq.s32.totalorder %s21, 1
      %p44 = por %p42, %p43
      %p46 = scmp.ne.s32.totalorder %s29, %s45
      %p47 = scmp.eq.s32.totalorder %s21, 0
      %p48 = por %p46, %p47
      %s50 = sadd.s32 %s49, 1
      %p53 = scmp.eq.s32.totalorder %s15, 1
      %p54 = scmp.ne.s32.totalorder %s49, %s51
      %p55 = scmp.eq.s32.totalorder %s15, 0
      %p56 = por %p54, %p55
      %p57 = scmp.ne.s32.totalorder %s49, %s51
      %p58 = scmp.eq.s32.totalorder %s20, 1
      %p59 = por %p57, %p58
      %p60 = scmp.ne.s32.totalorder %s51, %s52
      %p61 = scmp.eq.s32.totalorder %s20, 0
      %p62 = por %p60, %p61
      %p63 = scmp.ne.s32.totalorder %s51, %s52
      %p64 = scmp.eq.s32.totalorder %s21, 1
      %p65 = por %p63, %p64
      %p67 = scmp.ne.s32.totalorder %s52, %s66
      %p68 = scmp.eq.s32.totalorder %s21, 0
      %p69 = por %p67, %p68
      %s71 = sadd.s32 %s70, 1
      %p74 = scmp.eq.s32.totalorder %s15, 1
      %p75 = scmp.ne.s32.totalorder %s70, %s72
      %p76 = scmp.eq.s32.totalorder %s15, 0
      %p77 = por %p75, %p76
      %p78 = scmp.ne.s32.totalorder %s70, %s72
      %p79 = scmp.eq.s32.totalorder %s20, 1
      %p80 = por %p78, %p79
      %p81 = scmp.ne.s32.totalorder %s72, %s73
      %p82 = scmp.eq.s32.totalorder %s20, 0
      %p83 = por %p81, %p82
      %p84 = scmp.ne.s32.totalorder %s72, %s73
      %p85 = scmp.eq.s32.totalorder %s21, 1
      %p86 = por %p84, %p85
      %p88 = scmp.ne.s32.totalorder %s73, %s87
      %p89 = scmp.eq.s32.totalorder %s21, 0
      %p90 = por %p88, %p89
      %s91 = ssub.s32 %s15, %s22
      %p92 = scmp.eq.s32.totalorder %s91, 0
      %s94 = sadd.s32 %s93, 1
      %s95 = scalar_select %p92, %s93, %s94
      %p98 = pneg %p92
      %p99 = scmp.eq.s32.totalorder %s15, 1
      %p100 = por %p98, %p99
      %p101 = scmp.ne.s32.totalorder %s93, %s96
      %p102 = scmp.eq.s32.totalorder %s15, 0
      %p103 = por %p101, %p102
      %p104 = scmp.ne.s32.totalorder %s93, %s96
      %p105 = scmp.eq.s32.totalorder %s20, 1
      %p106 = por %p104, %p105
      %p107 = scmp.ne.s32.totalorder %s96, %s97
      %p108 = scmp.eq.s32.totalorder %s20, 0
      %p109 = por %p107, %p108
      %p110 = scmp.ne.s32.totalorder %s96, %s97
      %p111 = scmp.eq.s32.totalorder %s21, 1
      %p112 = por %p110, %p111
      %p114 = scmp.ne.s32.totalorder %s97, %s113
      %p115 = scmp.eq.s32.totalorder %s21, 0
      %p116 = por %p114, %p115
      %s117 = ssub.s32 %s15, %s22
      %p118 = scmp.eq.s32.totalorder %s117, 0
      %s120 = sadd.s32 %s119, 1
      %s121 = scalar_select %p118, %s119, %s120
      %p124 = pneg %p118
      %p125 = scmp.eq.s32.totalorder %s15, 1
      %p126 = por %p124, %p125
      %p127 = scmp.ne.s32.totalorder %s119, %s122
      %p128 = scmp.eq.s32.totalorder %s15, 0
      %p129 = por %p127, %p128
      %p130 = scmp.ne.s32.totalorder %s119, %s122
      %p131 = scmp.eq.s32.totalorder %s20, 1
      %p132 = por %p130, %p131
      %p133 = scmp.ne.s32.totalorder %s122, %s123
      %p134 = scmp.eq.s32.totalorder %s20, 0
      %p135 = por %p133, %p134
      %p136 = scmp.ne.s32.totalorder %s122, %s123
      %p137 = scmp.eq.s32.totalorder %s21, 1
      %p138 = por %p136, %p137
      %p140 = scmp.ne.s32.totalorder %s123, %s139
      %p141 = scmp.eq.s32.totalorder %s21, 0
      %p142 = por %p140, %p141
      %s143 = ssub.s32 %s15, %s22
      %p144 = scmp.eq.s32.totalorder %s143, 0
      %s146 = sadd.s32 %s145, 1
      %s147 = scalar_select %p144, %s145, %s146
      %p150 = pneg %p144
      %p151 = scmp.eq.s32.totalorder %s15, 1
      %p152 = por %p150, %p151
      %p153 = scmp.ne.s32.totalorder %s145, %s148
      %p154 = scmp.eq.s32.totalorder %s15, 0
      %p155 = por %p153, %p154
      %p156 = scmp.ne.s32.totalorder %s145, %s148
      %p157 = scmp.eq.s32.totalorder %s20, 1
      %p158 = por %p156, %p157
      %p159 = scmp.ne.s32.totalorder %s148, %s149
      %p160 = scmp.eq.s32.totalorder %s20, 0
      %p161 = por %p159, %p160
      %p162 = scmp.ne.s32.totalorder %s148, %s149
      %p163 = scmp.eq.s32.totalorder %s21, 1
      %p164 = por %p162, %p163
      %p166 = scmp.ne.s32.totalorder %s149, %s165
      %p167 = scmp.eq.s32.totalorder %s21, 0
      %p168 = por %p166, %p167
      %p169 = scmp.le.s32.totalorder 1, %s15
      %p170 = scmp.lt.s32.totalorder %s15, 3
      %p171 = pnand %p169, %p170
      %p172 = pneg %p171
      // Predicated region
      $region9: #{tpu_custom_call.1} parent=5 // pred_check
        _
      $region10: #{tpu_custom_call.1} parent=5 // pred_check_branch
        %174 = sbr.rel (%p171) target = $region12
      $region11: #{tpu_custom_call.1} parent=5 // pred_region
        %s175 = ssub.s32 %s15, 1
        // Predicated region
        $region13: #{tpu_custom_call.1} parent=11 // pred_check
          %p176 = pneg %p62
        $region14: #{tpu_custom_call.1} parent=11 // pred_check_branch
          %178 = sbr.rel (%p176) target = $region16
        $region15: #{tpu_custom_call.1} parent=11 // pred_region
          _
        $region16: #{tpu_custom_call.1} parent=11 // pred_fallthru
          _
        // Predicated region
        $region17: #{tpu_custom_call.1} parent=11 // pred_check
          %p179 = pneg %p83
        $region18: #{tpu_custom_call.1} parent=11 // pred_check_branch
          %181 = sbr.rel (%p179) target = $region20
        $region19: #{tpu_custom_call.1} parent=11 // pred_region
          _
        $region20: #{tpu_custom_call.1} parent=11 // pred_fallthru
          _
      $region12: #{tpu_custom_call.1} parent=5 // pred_fallthru
        _
      %p182 = scmp.lt.s32.totalorder %s15, 2
      // Predicated region
      $region21: #{tpu_custom_call.1} parent=5 // pred_check
        %p183 = pneg %p182
      $region22: #{tpu_custom_call.1} parent=5 // pred_check_branch
        %185 = sbr.rel (%p183) target = $region24
      $region23: #{tpu_custom_call.1} parent=5 // pred_region
        // Predicated region
        $region25: #{tpu_custom_call.1} parent=23 // pred_check
          %p186 = pneg %p35
        $region26: #{tpu_custom_call.1} parent=23 // pred_check_branch
          %188 = sbr.rel (%p186) target = $region28
        $region27: #{tpu_custom_call.1} parent=23 // pred_region
          %p189 = scmp.lt.s32.totalorder %s15, 1
          %s190 = scalar_select %p189, %s15, 1
          %s191 = smul.addr %s190, 3
          %s192 = smul.addr %s191, 2
          %s193 = scalar_lea.vmem %s0, %s192
        $region28: #{tpu_custom_call.1} parent=23 // pred_fallthru
          _
      $region24: #{tpu_custom_call.1} parent=5 // pred_fallthru
        _
      %p194 = scmp.le.s32.totalorder 1, %s15
      %p195 = scmp.lt.s32.totalorder %s15, 3
      %p196 = pnand %p194, %p195
      %p197 = pneg %p196
      // Predicated region
      $region29: #{tpu_custom_call.1} parent=5 // pred_check
        _
      $region30: #{tpu_custom_call.1} parent=5 // pred_check_branch
        %199 = sbr.rel (%p196) target = $region32
      $region31: #{tpu_custom_call.1} parent=5 // pred_region
        %s200 = ssub.s32 %s15, 1
        %p201 = scmp.lt.s32.totalorder %s20, 1
        %s202 = scalar_select %p201, %s20, 1
        %s203 = smul.addr %s202, 3
        %s204 = smul.addr %s203, 2
        %s205 = scalar_lea.vmem %s0, %s204
        %p206 = pneg %p41
        %p207 = pneg %p38
        %p208 = pneg %p62
        %p209 = pneg %p59
        %p210 = pneg %p83
        %p211 = pneg %p80
        %p212 = pneg %p109
        %p213 = pneg %p106
        %s214 = sand.u32 %s96, 1
        %s215 = scalar_lea.sflag [#allocation3], %s214
        %s216 = sand.u32 %s96, 1
        %s217 = smul.addr %s216, 8
        %s218 = scalar_lea.vmem [#allocation2], %s217
        %p219 = pneg %p135
        %p220 = pneg %p132
        %p221 = scmp.lt.s32.totalorder %s20, 1
        %s222 = scalar_select %p221, %s20, 1
        %s223 = smul.addr %s222, 8
        %s224 = scalar_lea.vmem %s4, %s223
        %p225 = pneg %p161
        %p226 = pneg %p158
        %p227 = scmp.lt.s32.totalorder %s20, 1
        %s228 = scalar_select %p227, %s20, 1
        %s229 = smul.addr %s228, 8
        %s230 = scalar_lea.vmem %s5, %s229
        %p231 = scmp.lt.s32.totalorder %s20, 1
        %s232 = scalar_select %p231, %s20, 1
        %s233 = smul.addr %s232, 3
        %s234 = smul.addr %s233, 2
        %s235 = scalar_lea.vmem %s0, %s234
        %p236 = scmp.lt.s32.totalorder %s20, 1
        %s237 = scalar_select %p236, %s20, 1
        %s238 = smul.addr %s237, 8
        %s239 = scalar_lea.vmem %s4, %s238
        %p240 = scmp.lt.s32.totalorder %s20, 1
        %s241 = scalar_select %p240, %s20, 1
        %s242 = smul.addr %s241, 8
        %s243 = scalar_lea.vmem %s5, %s242
        %v245 = vld [vmem:[%s235] sm:$0xf]
        %v246 = vld [vmem:[%s2] sm:$0x5]
        %248 = vst [vmem:[#allocation1] ss:$4 sm:$0xff] %v246
        %v249 = vld.sshfl [vmem:[#allocation1] sm:$0xff pattern:$0x73625140]
        %v250 = vld.sshfl [vmem:[#allocation1 + $0x8] sm:$0xff pattern:$0x73625140]
        %v251 = vpack.i.b16 %v249, %v249
        %v253 = vperm.slane %v251, 0
        %v254 = vpack.i.b16 %v250, %v250
        %v256 = vperm.slane %v254, 0
        %v257 = vunpack.c.l.bf16 %v245
        %v258 = vunpack.c.l.bf16 %v253
        %v259 = vunpack.c.l.bf16 %v256
        %v262 = vrot.slane %v259, 4
        %vm263 = vcmask 1043456
        %v264 = vsel %vm263, %v258, %v262
        %v266 = vmul.f32 %v257, %v264
        %268 = vst [vmem:[#allocation1] ss:$2 sm:$0xff] %v266
        %v269 = vld.sshfl [vmem:[#allocation1] sm:$0xff pattern:$0x75316420]
        %v270 = vld.sshfl [vmem:[#allocation1 + $0x8] sm:$0xff pattern:$0x75316420]
        %v273 = vpack.c.bf16 %v269, %v269
        %v274 = vpack.c.bf16 %v270, %v270
        %v275 = vld [vmem:[%s1] sm:$0xf]
        %v276 = vld [vmem:[%s235] sm:$0x3f]
        %s277 = scalar_lea.vmem %s1, 4
        %v278 = vld [vmem:[%s277] sm:$0xf]
        %280 = vst [vmem:[#allocation1] ss:$4 sm:$0xff] %v276
        %v281 = vld.sshfl [vmem:[#allocation1] sm:$0xff pattern:$0x73625140]
        %v283 = vld.sshfl [vmem:[#allocation1 + $0x8] sm:$0xff pattern:$0x73625140]
        %v285 = vld.sshfl [vmem:[#allocation1 + $0x10] sm:$0xff pattern:$0x73625140]
        %287 = vrot.lane.b32.xlu0 %v281, 127
        %v288 = vpop.permute.xlu0 %287
        %289 = vrot.lane.b32.xlu0 %v283, 127
        %v290 = vpop.permute.xlu0 %289
        %291 = vrot.lane.b32.xlu0 %v285, 127
        %v292 = vpop.permute.xlu0 %291
        %vm293 = vcmask 1039360
        %v294 = vsel %vm293, %v288, %v290
        %v295 = vsel %vm293, %v290, %v292
        %vm296 = vcmask 31744
        %v298 = vsel %vm296, %v278, 0
        %vm300 = vcmask 1041408
        %v302 = vsel %vm300, %v294, 0
        %v305 = vsel %vm300, %v295, 0
        %307 = vmatpush.bf16.msra.mxu0 0
        %308 = vmatpush.bf16.msra.mxu0 0
        %309 = vmatpush.bf16.msra.mxu0 0
        %310 = vmatpush.bf16.msra.mxu0 0
        %311 = vmatpush.bf16.msra.mxu0 0
        %312 = vmatpush.bf16.msra.mxu0 0
        %313 = vmatpush.bf16.msra.mxu0 0
        %314 = vmatpush.bf16.msra.mxu0 %v302
        %315 = vmatmul.bf16.gmra.mxu0 %v298
        %v316 = vpop.f32.mrf.mxu0
        %v317 = vadd.f32 0.0, %v316
        %v318 = vpop.f32.mrf.mxu0
        %319 = vdwg.mxu0
        %320 = vmatpush.bf16.msra.mxu0 0
        %321 = vmatpush.bf16.msra.mxu0 0
        %322 = vmatpush.bf16.msra.mxu0 0
        %323 = vmatpush.bf16.msra.mxu0 0
        %324 = vmatpush.bf16.msra.mxu0 0
        %325 = vmatpush.bf16.msra.mxu0 0
        %326 = vmatpush.bf16.msra.mxu0 0
        %327 = vmatpush.bf16.msra.mxu0 %v305
        %328 = vmatmul.bf16.gmra.mxu0 %v298
        %v329 = vpop.f32.mrf.mxu0
        %v330 = vadd.f32 0.0, %v329
        %v331 = vpop.f32.mrf.mxu0
        %332 = vdwg.mxu0
        %v334 = vsel %vm296, %v275, 0
        %v337 = vsel %vm300, %v273, 0
        %v340 = vsel %vm300, %v274, 0
        %342 = vmatpush.bf16.msra.mxu0 0
        %343 = vmatpush.bf16.msra.mxu0 0
        %344 = vmatpush.bf16.msra.mxu0 0
        %345 = vmatpush.bf16.msra.mxu0 0
        %346 = vmatpush.bf16.msra.mxu0 0
        %347 = vmatpush.bf16.msra.mxu0 0
        %348 = vmatpush.bf16.msra.mxu0 0
        %349 = vmatpush.bf16.msra.mxu0 %v337
        %350 = vmatmul.bf16.gmra.mxu0 %v334
        %v351 = vpop.f32.mrf.mxu0
        %v352 = vadd.f32 %v317, %v351
        %v353 = vpop.f32.mrf.mxu0
        %354 = vdwg.mxu0
        %355 = vmatpush.bf16.msra.mxu0 0
        %356 = vmatpush.bf16.msra.mxu0 0
        %357 = vmatpush.bf16.msra.mxu0 0
        %358 = vmatpush.bf16.msra.mxu0 0
        %359 = vmatpush.bf16.msra.mxu0 0
        %360 = vmatpush.bf16.msra.mxu0 0
        %361 = vmatpush.bf16.msra.mxu0 0
        %362 = vmatpush.bf16.msra.mxu0 %v340
        %363 = vmatmul.bf16.gmra.mxu0 %v334
        %v364 = vpop.f32.mrf.mxu0
        %v365 = vadd.f32 %v330, %v364
        %v366 = vpop.f32.mrf.mxu0
        %367 = vdwg.mxu0
        %v368 = vld [vmem:[%s235] sm:$0x3f]
        %v369 = vld [vmem:[%s2] sm:$0xa]
        %371 = vst [vmem:[#allocation1] ss:$4 sm:$0xff] %v369
        %v372 = vld.sshfl [vmem:[#allocation1] sm:$0xff pattern:$0x73625140]
        %v373 = vld.sshfl [vmem:[#allocation1 + $0x8] sm:$0xff pattern:$0x73625140]
        %v374 = vpack.i.b16 %v372, %v372
        %v376 = vperm.slane %v374, 1
        %v377 = vpack.i.b16 %v373, %v373
        %v379 = vperm.slane %v377, 1
        %v380 = vunpack.c.l.bf16 %v368
        %v381 = vunpack.c.h.bf16 %v368
        %v382 = vunpack.c.l.bf16 %v376
        %v383 = vunpack.c.l.bf16 %v379
        %v386 = vrot.slane %v383, 4
        %v387 = vsel %vm263, %v382, %v386
        %388 = vrot.lane.b32.xlu0 %v387, 2
        %v389 = vpop.permute.xlu0 %388
        %v390 = vrot.slane %v389, 4
        %vm391 = vcmask 15360
        %v392 = vsel %vm391, %v390, %v389
        %v395 = vmul.f32 %v380, %v392
        %v396 = vmul.f32 %v381, %v390
        %399 = vst [vmem:[#allocation1] ss:$2 sm:$0xff] %v395
        %s400 = scalar_lea.vmem [#allocation1], 16
        %401 = vst [vmem:[%s400] ss:$2 sm:$0xff] %v396
        %v402 = vld.sshfl [vmem:[#allocation1] sm:$0xff pattern:$0x75316420]
        %v403 = vld.sshfl [vmem:[#allocation1 + $0x8] sm:$0xff pattern:$0x75316420]
        %v404 = vld.sshfl [vmem:[#allocation1 + $0x10] sm:$0xff pattern:$0x75316420]
        %v408 = vpack.c.bf16 %v402, %v402
        %v409 = vpack.c.bf16 %v403, %v403
        %v410 = vpack.c.bf16 %v404, %v404
        %s411 = scalar_lea.vmem %s1, 8
        %v412 = vld [vmem:[%s411] sm:$0xf]
        %416 = vrot.lane.b32.xlu0 %v408, 126
        %v417 = vpop.permute.xlu0 %416
        %418 = vrot.lane.b32.xlu0 %v409, 126
        %v419 = vpop.permute.xlu0 %418
        %420 = vrot.lane.b32.xlu0 %v410, 126
        %v421 = vpop.permute.xlu0 %420
        %vm422 = vcmask 1031168
        %v423 = vsel %vm422, %v417, %v419
        %v424 = vsel %vm422, %v419, %v421
        %v426 = vsel %vm296, %v412, 0
        %v429 = vsel %vm300, %v423, 0
        %v432 = vsel %vm300, %v424, 0
        %434 = vmatpush.bf16.msra.mxu0 0
        %435 = vmatpush.bf16.msra.mxu0 0
        %436 = vmatpush.bf16.msra.mxu0 0
        %437 = vmatpush.bf16.msra.mxu0 0
        %438 = vmatpush.bf16.msra.mxu0 0
        %439 = vmatpush.bf16.msra.mxu0 0
        %440 = vmatpush.bf16.msra.mxu0 0
        %441 = vmatpush.bf16.msra.mxu0 %v429
        %442 = vmatmul.bf16.gmra.mxu0 %v426
        %v443 = vpop.f32.mrf.mxu0
        %v444 = vadd.f32 0.0, %v443
        %v445 = vpop.f32.mrf.mxu0
        %446 = vdwg.mxu0
        %447 = vmatpush.bf16.msra.mxu0 0
        %448 = vmatpush.bf16.msra.mxu0 0
        %449 = vmatpush.bf16.msra.mxu0 0
        %450 = vmatpush.bf16.msra.mxu0 0
        %451 = vmatpush.bf16.msra.mxu0 0
        %452 = vmatpush.bf16.msra.mxu0 0
        %453 = vmatpush.bf16.msra.mxu0 0
        %454 = vmatpush.bf16.msra.mxu0 %v432
        %455 = vmatmul.bf16.gmra.mxu0 %v426
        %v456 = vpop.f32.mrf.mxu0
        %v457 = vadd.f32 0.0, %v456
        %v458 = vpop.f32.mrf.mxu0
        %459 = vdwg.mxu0
        %v460 = vadd.f32 %v352, %v444
        %v461 = vadd.f32 %v365, %v457
        %v462 = vld [vmem:[%s235] sm:$0x3f]
        %v463 = vunpack.c.l.bf16 %v462
        %v464 = vunpack.c.h.bf16 %v462
        %465 = vrot.lane.b32.xlu0 %v264, 16
        %v466 = vpop.permute.xlu0 %465
        %v467 = vrot.slane %v466, 4
        %vm468 = vcmask 130048
        %v469 = vsel %vm468, %v467, %v466
        %v472 = vmul.f32 %v463, %v469
        %v473 = vmul.f32 %v464, %v467
        %476 = vst [vmem:[#allocation1] ss:$2 sm:$0xff] %v472
        %s477 = scalar_lea.vmem [#allocation1], 16
        %478 = vst [vmem:[%s477] ss:$2 sm:$0xff] %v473
        %v479 = vld.sshfl [vmem:[#allocation1] sm:$0xff pattern:$0x75316420]
        %v480 = vld.sshfl [vmem:[#allocation1 + $0x8] sm:$0xff pattern:$0x75316420]
        %v481 = vld.sshfl [vmem:[#allocation1 + $0x10] sm:$0xff pattern:$0x75316420]
        %v485 = vpack.c.bf16 %v479, %v479
        %v486 = vpack.c.bf16 %v480, %v480
        %v487 = vpack.c.bf16 %v481, %v481
        %s488 = scalar_lea.vmem %s1, 12
        %v489 = vld [vmem:[%s488] sm:$0xf]
        %493 = vrot.lane.b32.xlu0 %v485, 112
        %v494 = vpop.permute.xlu0 %493
        %495 = vrot.lane.b32.xlu0 %v486, 112
        %v496 = vpop.permute.xlu0 %495
        %497 = vrot.lane.b32.xlu0 %v487, 112
        %v498 = vpop.permute.xlu0 %497
        %vm499 = vcmask 916480
        %v500 = vsel %vm499, %v494, %v496
        %v501 = vsel %vm499, %v496, %v498
        %v503 = vsel %vm296, %v489, 0
        %v506 = vsel %vm300, %v500, 0
        %v509 = vsel %vm300, %v501, 0
        %511 = vmatpush.bf16.msra.mxu0 0
        %512 = vmatpush.bf16.msra.mxu0 0
        %513 = vmatpush.bf16.msra.mxu0 0
        %514 = vmatpush.bf16.msra.mxu0 0
        %515 = vmatpush.bf16.msra.mxu0 0
        %516 = vmatpush.bf16.msra.mxu0 0
        %517 = vmatpush.bf16.msra.mxu0 0
        %518 = vmatpush.bf16.msra.mxu0 %v506
        %519 = vmatmul.bf16.gmra.mxu0 %v503
        %v520 = vpop.f32.mrf.mxu0
        %v521 = vadd.f32 0.0, %v520
        %v522 = vpop.f32.mrf.mxu0
        %523 = vdwg.mxu0
        %524 = vmatpush.bf16.msra.mxu0 0
        %525 = vmatpush.bf16.msra.mxu0 0
        %526 = vmatpush.bf16.msra.mxu0 0
        %527 = vmatpush.bf16.msra.mxu0 0
        %528 = vmatpush.bf16.msra.mxu0 0
        %529 = vmatpush.bf16.msra.mxu0 0
        %530 = vmatpush.bf16.msra.mxu0 0
        %531 = vmatpush.bf16.msra.mxu0 %v509
        %532 = vmatmul.bf16.gmra.mxu0 %v503
        %v533 = vpop.f32.mrf.mxu0
        %v534 = vadd.f32 0.0, %v533
        %v535 = vpop.f32.mrf.mxu0
        %536 = vdwg.mxu0
        %v537 = vadd.f32 %v460, %v521
        %v538 = vadd.f32 %v461, %v534
        %v539 = vld [vmem:[%s235] sm:$0x3f]
        %s540 = scalar_lea.vmem %s1, 16
        %v541 = vld [vmem:[%s540] sm:$0xf]
        %543 = vst [vmem:[#allocation1] ss:$4 sm:$0xff] %v539
        %v544 = vld.sshfl [vmem:[#allocation1] sm:$0xff pattern:$0x73625140]
        %v546 = vld.sshfl [vmem:[#allocation1 + $0x8] sm:$0xff pattern:$0x73625140]
        %v548 = vld.sshfl [vmem:[#allocation1 + $0x10] sm:$0xff pattern:$0x73625140]
        %550 = vrot.lane.b32.xlu0 %v544, 111
        %v551 = vpop.permute.xlu0 %550
        %552 = vrot.lane.b32.xlu0 %v546, 111
        %v553 = vpop.permute.xlu0 %552
        %554 = vrot.lane.b32.xlu0 %v548, 111
        %v555 = vpop.permute.xlu0 %554
        %vm556 = vcmask 908288
        %v557 = vsel %vm556, %v551, %v553
        %v558 = vsel %vm556, %v553, %v555
        %v560 = vsel %vm296, %v541, 0
        %v563 = vsel %vm300, %v557, 0
        %v566 = vsel %vm300, %v558, 0
        %568 = vmatpush.bf16.msra.mxu0 0
        %569 = vmatpush.bf16.msra.mxu0 0
        %570 = vmatpush.bf16.msra.mxu0 0
        %571 = vmatpush.bf16.msra.mxu0 0
        %572 = vmatpush.bf16.msra.mxu0 0
        %573 = vmatpush.bf16.msra.mxu0 0
        %574 = vmatpush.bf16.msra.mxu0 0
        %575 = vmatpush.bf16.msra.mxu0 %v563
        %576 = vmatmul.bf16.gmra.mxu0 %v560
        %v577 = vpop.f32.mrf.mxu0
        %v578 = vadd.f32 0.0, %v577
        %v579 = vpop.f32.mrf.mxu0
        %580 = vdwg.mxu0
        %581 = vmatpush.bf16.msra.mxu0 0
        %582 = vmatpush.bf16.msra.mxu0 0
        %583 = vmatpush.bf16.msra.mxu0 0
        %584 = vmatpush.bf16.msra.mxu0 0
        %585 = vmatpush.bf16.msra.mxu0 0
        %586 = vmatpush.bf16.msra.mxu0 0
        %587 = vmatpush.bf16.msra.mxu0 0
        %588 = vmatpush.bf16.msra.mxu0 %v566
        %589 = vmatmul.bf16.gmra.mxu0 %v560
        %v590 = vpop.f32.mrf.mxu0
        %v591 = vadd.f32 0.0, %v590
        %v592 = vpop.f32.mrf.mxu0
        %593 = vdwg.mxu0
        %v594 = vadd.f32 %v537, %v578
        %v595 = vadd.f32 %v538, %v591
        %v596 = vld [vmem:[%s235] sm:$0x3f]
        %v597 = vunpack.c.l.bf16 %v596
        %v598 = vunpack.c.h.bf16 %v596
        %599 = vrot.lane.b32.xlu0 %v387, 18
        %v600 = vpop.permute.xlu0 %599
        %v601 = vrot.slane %v600, 4
        %vm602 = vcmask 146432
        %v603 = vsel %vm602, %v601, %v600
        %v606 = vmul.f32 %v597, %v603
        %v607 = vmul.f32 %v598, %v601
        %610 = vst [vmem:[#allocation1] ss:$2 sm:$0xff] %v606
        %s611 = scalar_lea.vmem [#allocation1], 16
        %612 = vst [vmem:[%s611] ss:$2 sm:$0xff] %v607
        %v613 = vld.sshfl [vmem:[#allocation1] sm:$0xff pattern:$0x75316420]
        %v614 = vld.sshfl [vmem:[#allocation1 + $0x8] sm:$0xff pattern:$0x75316420]
        %v615 = vld.sshfl [vmem:[#allocation1 + $0x10] sm:$0xff pattern:$0x75316420]
        %v619 = vpack.c.bf16 %v613, %v613
        %v620 = vpack.c.bf16 %v614, %v614
        %v621 = vpack.c.bf16 %v615, %v615
        %s622 = scalar_lea.vmem %s1, 20
        %v623 = vld [vmem:[%s622] sm:$0xf]
        %627 = vrot.lane.b32.xlu0 %v619, 110
        %v628 = vpop.permute.xlu0 %627
        %629 = vrot.lane.b32.xlu0 %v620, 110
        %v630 = vpop.permute.xlu0 %629
        %631 = vrot.lane.b32.xlu0 %v621, 110
        %v632 = vpop.permute.xlu0 %631
        %vm633 = vcmask 900096
        %v634 = vsel %vm633, %v628, %v630
        %v635 = vsel %vm633, %v630, %v632
        %v637 = vsel %vm296, %v623, 0
        %v640 = vsel %vm300, %v634, 0
        %v643 = vsel %vm300, %v635, 0
        %645 = vmatpush.bf16.msra.mxu0 0
        %646 = vmatpush.bf16.msra.mxu0 0
        %647 = vmatpush.bf16.msra.mxu0 0
        %648 = vmatpush.bf16.msra.mxu0 0
        %649 = vmatpush.bf16.msra.mxu0 0
        %650 = vmatpush.bf16.msra.mxu0 0
        %651 = vmatpush.bf16.msra.mxu0 0
        %652 = vmatpush.bf16.msra.mxu0 %v640
        %653 = vmatmul.bf16.gmra.mxu0 %v637
        %v654 = vpop.f32.mrf.mxu0
        %v655 = vadd.f32 0.0, %v654
        %v656 = vpop.f32.mrf.mxu0
        %657 = vdwg.mxu0
        %658 = vmatpush.bf16.msra.mxu0 0
        %659 = vmatpush.bf16.msra.mxu0 0
        %660 = vmatpush.bf16.msra.mxu0 0
        %661 = vmatpush.bf16.msra.mxu0 0
        %662 = vmatpush.bf16.msra.mxu0 0
        %663 = vmatpush.bf16.msra.mxu0 0
        %664 = vmatpush.bf16.msra.mxu0 0
        %665 = vmatpush.bf16.msra.mxu0 %v643
        %666 = vmatmul.bf16.gmra.mxu0 %v637
        %v667 = vpop.f32.mrf.mxu0
        %v668 = vadd.f32 0.0, %v667
        %v669 = vpop.f32.mrf.mxu0
        %670 = vdwg.mxu0
        %v671 = vadd.f32 %v594, %v655
        %v672 = vadd.f32 %v595, %v668
        %v673 = vld [vmem:[%s235] sm:$0x3f]
        %v674 = vunpack.c.l.bf16 %v673
        %v675 = vunpack.c.h.bf16 %v673
        %676 = vrot.lane.b32.xlu0 %v264, 32
        %v677 = vpop.permute.xlu0 %676
        %v678 = vrot.slane %v677, 4
        %vm679 = vcmask 261120
        %v680 = vsel %vm679, %v678, %v677
        %v683 = vmul.f32 %v674, %v680
        %v684 = vmul.f32 %v675, %v678
        %687 = vst [vmem:[#allocation1] ss:$2 sm:$0xff] %v683
        %s688 = scalar_lea.vmem [#allocation1], 16
        %689 = vst [vmem:[%s688] ss:$2 sm:$0xff] %v684
        %v690 = vld.sshfl [vmem:[#allocation1] sm:$0xff pattern:$0x75316420]
        %v691 = vld.sshfl [vmem:[#allocation1 + $0x8] sm:$0xff pattern:$0x75316420]
        %v692 = vld.sshfl [vmem:[#allocation1 + $0x10] sm:$0xff pattern:$0x75316420]
        %v696 = vpack.c.bf16 %v690, %v690
        %v697 = vpack.c.bf16 %v691, %v691
        %v698 = vpack.c.bf16 %v692, %v692
        %s699 = scalar_lea.vmem %s1, 24
        %v700 = vld [vmem:[%s699] sm:$0xf]
        %704 = vrot.lane.b32.xlu0 %v696, 96
        %v705 = vpop.permute.xlu0 %704
        %706 = vrot.lane.b32.xlu0 %v697, 96
        %v707 = vpop.permute.xlu0 %706
        %708 = vrot.lane.b32.xlu0 %v698, 96
        %v709 = vpop.permute.xlu0 %708
        %vm710 = vcmask 785408
        %v711 = vsel %vm710, %v705, %v707
        %v712 = vsel %vm710, %v707, %v709
        %v714 = vsel %vm296, %v700, 0
        %v717 = vsel %vm300, %v711, 0
        %v720 = vsel %vm300, %v712, 0
        %722 = vmatpush.bf16.msra.mxu0 0
        %723 = vmatpush.bf16.msra.mxu0 0
        %724 = vmatpush.bf16.msra.mxu0 0
        %725 = vmatpush.bf16.msra.mxu0 0
        %726 = vmatpush.bf16.msra.mxu0 0
        %727 = vmatpush.bf16.msra.mxu0 0
        %728 = vmatpush.bf16.msra.mxu0 0
        %729 = vmatpush.bf16.msra.mxu0 %v717
        %730 = vmatmul.bf16.gmra.mxu0 %v714
        %v731 = vpop.f32.mrf.mxu0
        %v732 = vadd.f32 0.0, %v731
        %v733 = vpop.f32.mrf.mxu0
        %734 = vdwg.mxu0
        %735 = vmatpush.bf16.msra.mxu0 0
        %736 = vmatpush.bf16.msra.mxu0 0
        %737 = vmatpush.bf16.msra.mxu0 0
        %738 = vmatpush.bf16.msra.mxu0 0
        %739 = vmatpush.bf16.msra.mxu0 0
        %740 = vmatpush.bf16.msra.mxu0 0
        %741 = vmatpush.bf16.msra.mxu0 0
        %742 = vmatpush.bf16.msra.mxu0 %v720
        %743 = vmatmul.bf16.gmra.mxu0 %v714
        %v744 = vpop.f32.mrf.mxu0
        %v745 = vadd.f32 0.0, %v744
        %v746 = vpop.f32.mrf.mxu0
        %747 = vdwg.mxu0
        %v748 = vadd.f32 %v671, %v732
        %v749 = vadd.f32 %v672, %v745
        %v750 = vld [vmem:[%s235] sm:$0x3f]
        %s751 = scalar_lea.vmem %s1, 28
        %v752 = vld [vmem:[%s751] sm:$0xf]
        %754 = vst [vmem:[#allocation1] ss:$4 sm:$0xff] %v750
        %v755 = vld.sshfl [vmem:[#allocation1] sm:$0xff pattern:$0x73625140]
        %v757 = vld.sshfl [vmem:[#allocation1 + $0x8] sm:$0xff pattern:$0x73625140]
        %v759 = vld.sshfl [vmem:[#allocation1 + $0x10] sm:$0xff pattern:$0x73625140]
        %761 = vrot.lane.b32.xlu0 %v755, 95
        %v762 = vpop.permute.xlu0 %761
        %763 = vrot.lane.b32.xlu0 %v757, 95
        %v764 = vpop.permute.xlu0 %763
        %765 = vrot.lane.b32.xlu0 %v759, 95
        %v766 = vpop.permute.xlu0 %765
        %vm767 = vcmask 777216
        %v768 = vsel %vm767, %v762, %v764
        %v769 = vsel %vm767, %v764, %v766
        %v771 = vsel %vm296, %v752, 0
        %v774 = vsel %vm300, %v768, 0
        %v777 = vsel %vm300, %v769, 0
        %779 = vmatpush.bf16.msra.mxu0 0
        %780 = vmatpush.bf16.msra.mxu0 0
        %781 = vmatpush.bf16.msra.mxu0 0
        %782 = vmatpush.bf16.msra.mxu0 0
        %783 = vmatpush.bf16.msra.mxu0 0
        %784 = vmatpush.bf16.msra.mxu0 0
        %785 = vmatpush.bf16.msra.mxu0 0
        %786 = vmatpush.bf16.msra.mxu0 %v774
        %787 = vmatmul.bf16.gmra.mxu0 %v771
        %v788 = vpop.f32.mrf.mxu0
        %v789 = vadd.f32 0.0, %v788
        %v790 = vpop.f32.mrf.mxu0
        %791 = vdwg.mxu0
        %792 = vmatpush.bf16.msra.mxu0 0
        %793 = vmatpush.bf16.msra.mxu0 0
        %794 = vmatpush.bf16.msra.mxu0 0
        %795 = vmatpush.bf16.msra.mxu0 0
        %796 = vmatpush.bf16.msra.mxu0 0
        %797 = vmatpush.bf16.msra.mxu0 0
        %798 = vmatpush.bf16.msra.mxu0 0
        %799 = vmatpush.bf16.msra.mxu0 %v777
        %800 = vmatmul.bf16.gmra.mxu0 %v771
        %v801 = vpop.f32.mrf.mxu0
        %v802 = vadd.f32 0.0, %v801
        %v803 = vpop.f32.mrf.mxu0
        %804 = vdwg.mxu0
        %v805 = vadd.f32 %v748, %v789
        %v806 = vadd.f32 %v749, %v802
        %v807 = vld [vmem:[%s235] sm:$0x3f]
        %v808 = vunpack.c.l.bf16 %v807
        %v809 = vunpack.c.h.bf16 %v807
        %810 = vrot.lane.b32.xlu0 %v387, 34
        %v811 = vpop.permute.xlu0 %810
        %v812 = vrot.slane %v811, 4
        %vm813 = vcmask 277504
        %v814 = vsel %vm813, %v812, %v811
        %v817 = vmul.f32 %v808, %v814
        %v818 = vmul.f32 %v809, %v812
        %821 = vst [vmem:[#allocation1] ss:$2 sm:$0xff] %v817
        %s822 = scalar_lea.vmem [#allocation1], 16
        %823 = vst [vmem:[%s822] ss:$2 sm:$0xff] %v818
        %v824 = vld.sshfl [vmem:[#allocation1] sm:$0xff pattern:$0x75316420]
        %v825 = vld.sshfl [vmem:[#allocation1 + $0x8] sm:$0xff pattern:$0x75316420]
        %v826 = vld.sshfl [vmem:[#allocation1 + $0x10] sm:$0xff pattern:$0x75316420]
        %v830 = vpack.c.bf16 %v824, %v824
        %v831 = vpack.c.bf16 %v825, %v825
        %v832 = vpack.c.bf16 %v826, %v826
        %s833 = scalar_lea.vmem %s1, 32
        %v834 = vld [vmem:[%s833] sm:$0xf]
        %838 = vrot.lane.b32.xlu0 %v830, 94
        %v839 = vpop.permute.xlu0 %838
        %840 = vrot.lane.b32.xlu0 %v831, 94
        %v841 = vpop.permute.xlu0 %840
        %842 = vrot.lane.b32.xlu0 %v832, 94
        %v843 = vpop.permute.xlu0 %842
        %vm844 = vcmask 769024
        %v845 = vsel %vm844, %v839, %v841
        %v846 = vsel %vm844, %v841, %v843
        %v848 = vsel %vm296, %v834, 0
        %v851 = vsel %vm300, %v845, 0
        %v854 = vsel %vm300, %v846, 0
        %856 = vmatpush.bf16.msra.mxu0 0
        %857 = vmatpush.bf16.msra.mxu0 0
        %858 = vmatpush.bf16.msra.mxu0 0
        %859 = vmatpush.bf16.msra.mxu0 0
        %860 = vmatpush.bf16.msra.mxu0 0
        %861 = vmatpush.bf16.msra.mxu0 0
        %862 = vmatpush.bf16.msra.mxu0 0
        %863 = vmatpush.bf16.msra.mxu0 %v851
        %864 = vmatmul.bf16.gmra.mxu0 %v848
        %v865 = vpop.f32.mrf.mxu0
        %v866 = vadd.f32 0.0, %v865
        %v867 = vpop.f32.mrf.mxu0
        %868 = vdwg.mxu0
        %869 = vmatpush.bf16.msra.mxu0 0
        %870 = vmatpush.bf16.msra.mxu0 0
        %871 = vmatpush.bf16.msra.mxu0 0
        %872 = vmatpush.bf16.msra.mxu0 0
        %873 = vmatpush.bf16.msra.mxu0 0
        %874 = vmatpush.bf16.msra.mxu0 0
        %875 = vmatpush.bf16.msra.mxu0 0
        %876 = vmatpush.bf16.msra.mxu0 %v854
        %877 = vmatmul.bf16.gmra.mxu0 %v848
        %v878 = vpop.f32.mrf.mxu0
        %v879 = vadd.f32 0.0, %v878
        %v880 = vpop.f32.mrf.mxu0
        %881 = vdwg.mxu0
        %v882 = vadd.f32 %v805, %v866
        %v883 = vadd.f32 %v806, %v879
        %v884 = vpack.c.bf16 %v883, %v882
        %885 = vst [vmem:[%s218] sm:$0xff] %v884
        %v886 = vadd.f32 %v882, %v883
        %887 = vadd.xlane.f32.xlu0 %v886
        %v888 = vpop.xlane.xlu0 %887
        %vm889 = vcmask 7168
        %890 = vst.msk [vmem:[%s239] sm:$0xff] %vm889, %v888
        %v891 = vmul.f32 %v882, %v882
        %v892 = vmul.f32 %v883, %v883
        %v893 = vadd.f32 %v891, %v892
        %894 = vadd.xlane.f32.xlu0 %v893
        %v895 = vpop.xlane.xlu0 %894
        %896 = vst.msk [vmem:[%s243] sm:$0xff] %vm889, %v895
        %s897 = sand.u32 %s96, 1
        %s898 = scalar_lea.sflag [#allocation3], %s897
        %s899 = sand.u32 %s96, 1
        %s900 = smul.addr %s899, 8
        %s901 = scalar_lea.vmem [#allocation2], %s900
        %p902 = scmp.lt.s32.totalorder %s20, 1
        %s903 = scalar_select %p902, %s20, 1
        %s904 = smul.addr %s903, 8
        %s905 = scalar_lea.vmem %s4, %s904
        %p906 = scmp.lt.s32.totalorder %s20, 1
        %s907 = scalar_select %p906, %s20, 1
        %s908 = smul.addr %s907, 8
        %s909 = scalar_lea.vmem %s5, %s908
        // Predicated region
        $region33: #{tpu_custom_call.1} parent=31 // pred_check
          %p910 = pneg %p106
        $region34: #{tpu_custom_call.1} parent=31 // pred_check_branch
          %912 = sbr.rel (%p910) target = $region36
        $region35: #{tpu_custom_call.1} parent=31 // pred_region
          %914 = vsyncadd %s898, 0
          %s915 = smul.addr %s20, 2
          %s916 = smul.addr %s915, 4
          %s917 = scalar_lea.hbm %s3, %s916
          %s919 = sshll.u32 %s901, 4
          %s920 = int_to_ptr.vmem [resolvable:$true] %s919
          %s921 = sshll.u32 %s917, 4
          %s922 = int_to_ptr.hbm [resolvable:$true] %s921
          %924 = dma.vmem_to_hbm [thread:$0]  %s920, 128, %s922, %s898
        $region36: #{tpu_custom_call.1} parent=31 // pred_fallthru
          _
        // Predicated region
        $region37: #{tpu_custom_call.1} parent=31 // pred_check
          %p925 = pneg %p132
        $region38: #{tpu_custom_call.1} parent=31 // pred_check_branch
          %927 = sbr.rel (%p925) target = $region40
        $region39: #{tpu_custom_call.1} parent=31 // pred_region
          _
        $region40: #{tpu_custom_call.1} parent=31 // pred_fallthru
          _
        // Predicated region
        $region41: #{tpu_custom_call.1} parent=31 // pred_check
          %p928 = pneg %p158
        $region42: #{tpu_custom_call.1} parent=31 // pred_check_branch
          %930 = sbr.rel (%p928) target = $region44
        $region43: #{tpu_custom_call.1} parent=31 // pred_region
          _
        $region44: #{tpu_custom_call.1} parent=31 // pred_fallthru
          _
      $region32: #{tpu_custom_call.1} parent=5 // pred_fallthru
        _
      %p931 = scmp.le.s32.totalorder 2, %s15
      // Predicated region
      $region45: #{tpu_custom_call.1} parent=5 // pred_check
        %p932 = pneg %p931
      $region46: #{tpu_custom_call.1} parent=5 // pred_check_branch
        %934 = sbr.rel (%p932) target = $region48
      $region47: #{tpu_custom_call.1} parent=5 // pred_region
        %s935 = ssub.s32 %s15, 2
        // Predicated region
        $region49: #{tpu_custom_call.1} parent=47 // pred_check
          %p936 = pneg %p112
        $region50: #{tpu_custom_call.1} parent=47 // pred_check_branch
          %938 = sbr.rel (%p936) target = $region52
        $region51: #{tpu_custom_call.1} parent=47 // pred_region
          %s939 = sand.u32 %s97, 1
          %s940 = scalar_lea.sflag [#allocation3], %s939
          %s941 = sand.u32 %s97, 1
          %s942 = smul.addr %s941, 8
          %s943 = scalar_lea.vmem [#allocation2], %s942
          %945 = dma.done %s940, 128
        $region52: #{tpu_custom_call.1} parent=47 // pred_fallthru
          _
        // Predicated region
        $region53: #{tpu_custom_call.1} parent=47 // pred_check
          %p946 = pneg %p138
        $region54: #{tpu_custom_call.1} parent=47 // pred_check_branch
          %948 = sbr.rel (%p946) target = $region56
        $region55: #{tpu_custom_call.1} parent=47 // pred_region
          %p949 = scmp.lt.s32.totalorder %s21, 1
          %s950 = scalar_select %p949, %s21, 1
          %s951 = smul.addr %s950, 8
          %s952 = scalar_lea.vmem %s4, %s951
        $region56: #{tpu_custom_call.1} parent=47 // pred_fallthru
          _
        // Predicated region
        $region57: #{tpu_custom_call.1} parent=47 // pred_check
          %p953 = pneg %p164
        $region58: #{tpu_custom_call.1} parent=47 // pred_check_branch
          %955 = sbr.rel (%p953) target = $region60
        $region59: #{tpu_custom_call.1} parent=47 // pred_region
          %p956 = scmp.lt.s32.totalorder %s21, 1
          %s957 = scalar_select %p956, %s21, 1
          %s958 = smul.addr %s957, 8
          %s959 = scalar_lea.vmem %s5, %s958
        $region60: #{tpu_custom_call.1} parent=47 // pred_fallthru
          _
      $region48: #{tpu_custom_call.1} parent=5 // pred_fallthru
        _
    $region6: #{tpu_custom_call.1} parent=1 // loop_footer
      %s19 = sadd.s32 1, %s15
    $region7: #{tpu_custom_call.1} parent=1 // loop_footer_branch
      %14 = sbr.rel target = $region3
    $region8: #{tpu_custom_call.1} parent=1 // loop_exit
      _
    %960 = vsyncpa [#allocation3], 1
    %s961 = scalar_lea.sflag [#allocation3], 1
    %962 = vsyncpa %s961, 1

</llo_original>
